<compile_context>
chip_gen: v7x
topology: tpu7x:2x2x1
jax: 0.10.0
libtpu: 0.0.40
codegen_flags: <defaults>
</compile_context>

<pallas_src>
import jax
import jax.numpy as jnp
from jax import lax
from jax.experimental import pallas as pl
from jax.experimental.pallas import tpu as pltpu

_LANE = 128
_SUBLANE = 8
_NEG_INF = -1e30


def _round_up(x, m):
    return (x + m - 1) // m * m


def bow_kernel(word_ref, img_ref, emb_ref, w_bow_ref, w_img_ref, b_ref, out_ref):
    TB, L = word_ref.shape                 # batch tile, sequence length
    Vp = emb_ref.shape[0]                  # padded vocab rows (multiple of 128)

    # ---- bag-of-words: token counts accumulated 2-D, summed on the MXU ----
    word = word_ref[...]                                           # (TB, L) int32
    vocab_iota = lax.broadcasted_iota(jnp.int32, (TB, Vp), 1)      # (TB, Vp)
    counts = jnp.zeros((TB, Vp), jnp.float32)
    for l in range(L):                     # unrolled; L is small and static
        counts = counts + (word[:, l:l + 1] == vocab_iota).astype(jnp.float32)

    # counts are small integers (<= L), exact in bf16 -> bf16 MXU path, f32 accum.
    bow = jnp.dot(counts.astype(jnp.bfloat16), emb_ref[...],
                  preferred_element_type=jnp.float32)              # (TB, E) f32

    # TODO(synk): dropout on `bow` not implemented (dropout_prob=0 in this config).

    # ---- linear over concat([bow, image], 1): weight split across the boundary ----
    lin = (jnp.dot(bow, w_bow_ref[...].astype(jnp.float32),
                   preferred_element_type=jnp.float32)
           + jnp.dot(img_ref[...], w_img_ref[...].astype(jnp.float32),
                     preferred_element_type=jnp.float32)
           + b_ref[...])                                           # (TB, O_pad)

    # ---- LogSoftmax over dim 1 ----
    # Padded output columns carry bias = -1e30, so exp() underflows to 0 and they
    # do not perturb the max / sum over the real O columns.
    m = jnp.max(lin, axis=1, keepdims=True)
    lse = m + jnp.log(jnp.sum(jnp.exp(lin - m), axis=1, keepdims=True))
    out_ref[...] = lin - lse


def bow_model_forward(word_features, image_features, emb_table, w_full, bias):
    """PyTorch-layout params: emb_table (V+1, E) f32 (row V = padding, zeros),
    w_full (O, E+I) f32, bias (O,) f32.  Returns (B, O) f32 log-probs."""
    B, L = word_features.shape
    Vp1, E = emb_table.shape
    O, F = w_full.shape
    I = F - E
    padding_idx = Vp1 - 1

    # ---- pad shapes for lane/sublane density ----
    B_pad = _round_up(B, _SUBLANE)         # sublane-filled batch
    O_pad = _round_up(O, _LANE)            # lane-dense output
    V_pad = _round_up(Vp1, _LANE)          # lane-dense one-hot / counts

    word_p = jnp.full((B_pad, L), padding_idx, dtype=jnp.int32)
    word_p = word_p.at[:B].set(word_features.astype(jnp.int32))
    img_p = jnp.zeros((B_pad, I), jnp.float32).at[:B].set(
        image_features.astype(jnp.float32))

    # bf16 storage; extra vocab rows are zeros (never matched by real tokens).
    emb_p = jnp.zeros((V_pad, E), jnp.bfloat16).at[:Vp1].set(
        emb_table.astype(jnp.bfloat16))

    # Split weight across the concat boundary, pre-transpose for x @ W, bf16
    # storage, zero-pad output columns; padded bias columns get -1e30 so they
    # drop out of the in-kernel log-softmax.
    w_bow = jnp.zeros((E, O_pad), jnp.bfloat16).at[:, :O].set(
        jnp.transpose(w_full[:, :E]).astype(jnp.bfloat16))
    w_img = jnp.zeros((I, O_pad), jnp.bfloat16).at[:, :O].set(
        jnp.transpose(w_full[:, E:]).astype(jnp.bfloat16))
    b_p = jnp.full((1, O_pad), _NEG_INF, dtype=jnp.float32).at[0, :O].set(
        bias.astype(jnp.float32))

    TB = _SUBLANE
    grid = (B_pad // TB,)

    out = pl.pallas_call(
        bow_kernel,
        out_shape=jax.ShapeDtypeStruct((B_pad, O_pad), jnp.float32),
        grid_spec=pltpu.PrefetchScalarGridSpec(
            num_scalar_prefetch=0,
            grid=grid,
            in_specs=[
                pl.BlockSpec((TB, L), lambda i: (i, 0)),       # word tokens
                pl.BlockSpec((TB, I), lambda i: (i, 0)),       # image features
                pl.BlockSpec((V_pad, E), lambda i: (0, 0)),    # embedding table
                pl.BlockSpec((E, O_pad), lambda i: (0, 0)),    # W (bow half)
                pl.BlockSpec((I, O_pad), lambda i: (0, 0)),    # W (image half)
                pl.BlockSpec((1, O_pad), lambda i: (0, 0)),    # bias (padded)
            ],
            out_specs=pl.BlockSpec((TB, O_pad), lambda i: (i, 0)),
        ),
        compiler_params=pltpu.CompilerParams(
            dimension_semantics=("parallel",),
            vmem_limit_bytes=64 * 1024 * 1024,
        ),
    )(word_p, img_p, emb_p, w_bow, w_img, b_p)

    return out[:B, :O]


if __name__ == "__main__":
    # small config consistent with the module's __init__
    vocab_features_dim = 32     # V  (padding_idx == V, table has V+1 rows)
    embedding_dim = 16          # E
    image_features_dim = 16     # I
    output_dim = 8              # O
    B, L = 2, 8

    key = jax.random.PRNGKey(0)
    k_emb, k_w, k_b, k_word, k_img = jax.random.split(key, 5)

    # nn.Embedding default init: N(0, 1), padding row zeroed.
    emb_table = jax.random.normal(
        k_emb, (vocab_features_dim + 1, embedding_dim), dtype=jnp.float32)
    emb_table = emb_table.at[vocab_features_dim].set(0.0)

    # nn.Linear default init: U(-1/sqrt(fan_in), 1/sqrt(fan_in)).
    fan_in = image_features_dim + embedding_dim
    bound = 1.0 / (fan_in ** 0.5)
    w_full = jax.random.uniform(
        k_w, (output_dim, fan_in), minval=-bound, maxval=bound, dtype=jnp.float32)
    bias = jax.random.uniform(
        k_b, (output_dim,), minval=-bound, maxval=bound, dtype=jnp.float32)

    # inputs: some tokens equal padding_idx to exercise padding semantics
    word_features = jax.random.randint(
        k_word, (B, L), 0, vocab_features_dim + 1, dtype=jnp.int32)
    image_features = jax.random.normal(
        k_img, (B, image_features_dim), dtype=jnp.float32)

    out = bow_model_forward(word_features, image_features, emb_table, w_full, bias)
    jax.block_until_ready(out)

    # Reference: same math path as the PyTorch module.  The kernel stores the
    # embedding table / linear weights in bf16, so the reference uses those
    # bf16-rounded parameter values (cast back to f32) — the check then verifies
    # the kernel math rather than bf16 parameter quantization.
    emb_q = emb_table.astype(jnp.bfloat16).astype(jnp.float32)
    w_q = w_full.astype(jnp.bfloat16).astype(jnp.float32)
    emb_rows = emb_q[word_features]                            # (B, L, E)
    bow_ref = jnp.sum(emb_rows, axis=1)                        # (B, E)
    feats = jnp.concatenate([bow_ref, image_features], axis=1) # (B, E+I)
    lin_ref = feats @ w_q.T + bias[None, :]                    # (B, O)
    ref = jax.nn.log_softmax(lin_ref, axis=1)

    assert out.shape == (B, output_dim)
    assert jnp.allclose(out, ref, atol=1e-5, rtol=1e-5), \
        float(jnp.max(jnp.abs(out - ref)))

    print("KERNEL_OK")
</pallas_src>

<mosaic_0001>
module attributes {stable_mosaic.version = 11 : i64} {
  func.func @bow_kernel(%arg0: i32, %arg1: memref<8x8xi32, #tpu.memory_space<vmem>>, %arg2: memref<8x16xf32, #tpu.memory_space<vmem>>, %arg3: memref<128x16xbf16, #tpu.memory_space<vmem>>, %arg4: memref<16x128xbf16, #tpu.memory_space<vmem>>, %arg5: memref<16x128xbf16, #tpu.memory_space<vmem>>, %arg6: memref<1x128xf32, #tpu.memory_space<vmem>>, %arg7: memref<8x128xf32, #tpu.memory_space<vmem>>) attributes {dimension_semantics = [#tpu.dimension_semantics<parallel>], iteration_bounds = array<i64: 1>, scalar_prefetch = 0 : i64, scratch_operands = 0 : i64, tpu.core_type = #tpu.core_type<tc>, window_params = [{transform_indices = @transform_0, window_bounds = array<i64: 8, 8>}, {transform_indices = @transform_1, window_bounds = array<i64: 8, 16>}, {pipeline_mode = #tpu.pipeline_mode<synchronous>, transform_indices = @transform_2, window_bounds = array<i64: 128, 16>}, {pipeline_mode = #tpu.pipeline_mode<synchronous>, transform_indices = @transform_3, window_bounds = array<i64: 16, 128>}, {pipeline_mode = #tpu.pipeline_mode<synchronous>, transform_indices = @transform_4, window_bounds = array<i64: 16, 128>}, {pipeline_mode = #tpu.pipeline_mode<synchronous>, transform_indices = @transform_5, window_bounds = array<i64: 1, 128>}, {transform_indices = @transform_6, window_bounds = array<i64: 8, 128>}]} {
    %c0 = arith.constant 0 : index
    %c0_0 = arith.constant 0 : index
    %0 = vector.load %arg1[%c0, %c0_0] : memref<8x8xi32, #tpu.memory_space<vmem>>, vector<8x8xi32>
    %1 = tpu.iota {dimensions = array<i32: 1>} : vector<8x128xi32>
    %cst = arith.constant 0.000000e+00 : f32
    %2 = vector.broadcast %cst : f32 to vector<8x128xf32>
    %3 = vector.extract_strided_slice %0 {offsets = [0, 0], sizes = [8, 1], strides = [1, 1]} : vector<8x8xi32> to vector<8x1xi32>
    %4 = vector.broadcast %3 : vector<8x1xi32> to vector<8x128xi32>
    %5 = arith.cmpi eq, %4, %1 : vector<8x128xi32>
    %6 = arith.extui %5 : vector<8x128xi1> to vector<8x128xi32>
    %7 = arith.sitofp %6 : vector<8x128xi32> to vector<8x128xf32>
    %8 = arith.addf %2, %7 : vector<8x128xf32>
    %9 = vector.extract_strided_slice %0 {offsets = [0, 1], sizes = [8, 1], strides = [1, 1]} : vector<8x8xi32> to vector<8x1xi32>
    %10 = vector.broadcast %9 : vector<8x1xi32> to vector<8x128xi32>
    %11 = arith.cmpi eq, %10, %1 : vector<8x128xi32>
    %12 = arith.extui %11 : vector<8x128xi1> to vector<8x128xi32>
    %13 = arith.sitofp %12 : vector<8x128xi32> to vector<8x128xf32>
    %14 = arith.addf %8, %13 : vector<8x128xf32>
    %15 = vector.extract_strided_slice %0 {offsets = [0, 2], sizes = [8, 1], strides = [1, 1]} : vector<8x8xi32> to vector<8x1xi32>
    %16 = vector.broadcast %15 : vector<8x1xi32> to vector<8x128xi32>
    %17 = arith.cmpi eq, %16, %1 : vector<8x128xi32>
    %18 = arith.extui %17 : vector<8x128xi1> to vector<8x128xi32>
    %19 = arith.sitofp %18 : vector<8x128xi32> to vector<8x128xf32>
    %20 = arith.addf %14, %19 : vector<8x128xf32>
    %21 = vector.extract_strided_slice %0 {offsets = [0, 3], sizes = [8, 1], strides = [1, 1]} : vector<8x8xi32> to vector<8x1xi32>
    %22 = vector.broadcast %21 : vector<8x1xi32> to vector<8x128xi32>
    %23 = arith.cmpi eq, %22, %1 : vector<8x128xi32>
    %24 = arith.extui %23 : vector<8x128xi1> to vector<8x128xi32>
    %25 = arith.sitofp %24 : vector<8x128xi32> to vector<8x128xf32>
    %26 = arith.addf %20, %25 : vector<8x128xf32>
    %27 = vector.extract_strided_slice %0 {offsets = [0, 4], sizes = [8, 1], strides = [1, 1]} : vector<8x8xi32> to vector<8x1xi32>
    %28 = vector.broadcast %27 : vector<8x1xi32> to vector<8x128xi32>
    %29 = arith.cmpi eq, %28, %1 : vector<8x128xi32>
    %30 = arith.extui %29 : vector<8x128xi1> to vector<8x128xi32>
    %31 = arith.sitofp %30 : vector<8x128xi32> to vector<8x128xf32>
    %32 = arith.addf %26, %31 : vector<8x128xf32>
    %33 = vector.extract_strided_slice %0 {offsets = [0, 5], sizes = [8, 1], strides = [1, 1]} : vector<8x8xi32> to vector<8x1xi32>
    %34 = vector.broadcast %33 : vector<8x1xi32> to vector<8x128xi32>
    %35 = arith.cmpi eq, %34, %1 : vector<8x128xi32>
    %36 = arith.extui %35 : vector<8x128xi1> to vector<8x128xi32>
    %37 = arith.sitofp %36 : vector<8x128xi32> to vector<8x128xf32>
    %38 = arith.addf %32, %37 : vector<8x128xf32>
    %39 = vector.extract_strided_slice %0 {offsets = [0, 6], sizes = [8, 1], strides = [1, 1]} : vector<8x8xi32> to vector<8x1xi32>
    %40 = vector.broadcast %39 : vector<8x1xi32> to vector<8x128xi32>
    %41 = arith.cmpi eq, %40, %1 : vector<8x128xi32>
    %42 = arith.extui %41 : vector<8x128xi1> to vector<8x128xi32>
    %43 = arith.sitofp %42 : vector<8x128xi32> to vector<8x128xf32>
    %44 = arith.addf %38, %43 : vector<8x128xf32>
    %45 = vector.extract_strided_slice %0 {offsets = [0, 7], sizes = [8, 1], strides = [1, 1]} : vector<8x8xi32> to vector<8x1xi32>
    %46 = vector.broadcast %45 : vector<8x1xi32> to vector<8x128xi32>
    %47 = arith.cmpi eq, %46, %1 : vector<8x128xi32>
    %48 = arith.extui %47 : vector<8x128xi1> to vector<8x128xi32>
    %49 = arith.sitofp %48 : vector<8x128xi32> to vector<8x128xf32>
    %50 = arith.addf %44, %49 : vector<8x128xf32>
    %51 = arith.truncf %50 : vector<8x128xf32> to vector<8x128xbf16>
    %c0_1 = arith.constant 0 : index
    %c0_2 = arith.constant 0 : index
    %52 = vector.load %arg3[%c0_1, %c0_2] : memref<128x16xbf16, #tpu.memory_space<vmem>>, vector<128x16xbf16>
    %cst_3 = arith.constant dense<0.000000e+00> : vector<8x16xf32>
    %53 = tpu.matmul %51, %52, %cst_3 {dimension_numbers = #tpu.dot_dimension_numbers<[1], [0], [0], [1], [0, 0, 1, 1], [], []>} : vector<8x128xbf16>, vector<128x16xbf16>, vector<8x16xf32> -> vector<8x16xf32>
    %c0_4 = arith.constant 0 : index
    %c0_5 = arith.constant 0 : index
    %54 = vector.load %arg4[%c0_4, %c0_5] : memref<16x128xbf16, #tpu.memory_space<vmem>>, vector<16x128xbf16>
    %55 = arith.extf %54 : vector<16x128xbf16> to vector<16x128xf32>
    %cst_6 = arith.constant dense<0.000000e+00> : vector<8x128xf32>
    %56 = tpu.matmul %53, %55, %cst_6 {dimension_numbers = #tpu.dot_dimension_numbers<[1], [0], [0], [1], [0, 0, 1, 1], [], []>} : vector<8x16xf32>, vector<16x128xf32>, vector<8x128xf32> -> vector<8x128xf32>
    %c0_7 = arith.constant 0 : index
    %c0_8 = arith.constant 0 : index
    %57 = vector.load %arg2[%c0_7, %c0_8] : memref<8x16xf32, #tpu.memory_space<vmem>>, vector<8x16xf32>
    %c0_9 = arith.constant 0 : index
    %c0_10 = arith.constant 0 : index
    %58 = vector.load %arg5[%c0_9, %c0_10] : memref<16x128xbf16, #tpu.memory_space<vmem>>, vector<16x128xbf16>
    %59 = arith.extf %58 : vector<16x128xbf16> to vector<16x128xf32>
    %cst_11 = arith.constant dense<0.000000e+00> : vector<8x128xf32>
    %60 = tpu.matmul %57, %59, %cst_11 {dimension_numbers = #tpu.dot_dimension_numbers<[1], [0], [0], [1], [0, 0, 1, 1], [], []>} : vector<8x16xf32>, vector<16x128xf32>, vector<8x128xf32> -> vector<8x128xf32>
    %61 = arith.addf %56, %60 : vector<8x128xf32>
    %c0_12 = arith.constant 0 : index
    %c0_13 = arith.constant 0 : index
    %62 = vector.load %arg6[%c0_12, %c0_13] : memref<1x128xf32, #tpu.memory_space<vmem>>, vector<1x128xf32>
    %63 = vector.broadcast %62 : vector<1x128xf32> to vector<8x128xf32>
    %64 = arith.addf %61, %63 : vector<8x128xf32>
    %cst_14 = arith.constant dense<0xFF800000> : vector<8xf32>
    %65 = vector.multi_reduction <maximumf>, %64, %cst_14 [1] : vector<8x128xf32> to vector<8xf32>
    %66 = vector.shape_cast %65 : vector<8xf32> to vector<8x1xf32>
    %67 = vector.broadcast %66 : vector<8x1xf32> to vector<8x128xf32>
    %68 = arith.subf %64, %67 : vector<8x128xf32>
    %69 = math.exp %68 : vector<8x128xf32>
    %cst_15 = arith.constant dense<0.000000e+00> : vector<8xf32>
    %70 = vector.multi_reduction <add>, %69, %cst_15 [1] : vector<8x128xf32> to vector<8xf32>
    %71 = vector.shape_cast %70 : vector<8xf32> to vector<8x1xf32>
    %72 = math.log %71 : vector<8x1xf32>
    %73 = arith.addf %66, %72 : vector<8x1xf32>
    %74 = vector.broadcast %73 : vector<8x1xf32> to vector<8x128xf32>
    %75 = arith.subf %64, %74 : vector<8x128xf32>
    %c0_16 = arith.constant 0 : index
    %c0_17 = arith.constant 0 : index
    %76 = vector.load %arg7[%c0_16, %c0_17] : memref<8x128xf32, #tpu.memory_space<vmem>>, vector<8x128xf32>
    tpu.vector_store %arg7[%c0_16, %c0_17], %75 {strides = array<i32>} : memref<8x128xf32, #tpu.memory_space<vmem>>, vector<8x128xf32>,
    return
  }
  func.func @transform_0(%arg0: i32) -> (i32, i32) {
    %c0_i32 = arith.constant 0 : i32
    %c0_i32_0 = arith.constant 0 : i32
    return %arg0, %c0_i32 : i32, i32
  }
  func.func @transform_1(%arg0: i32) -> (i32, i32) {
    %c0_i32 = arith.constant 0 : i32
    %c0_i32_0 = arith.constant 0 : i32
    return %arg0, %c0_i32 : i32, i32
  }
  func.func @transform_2(%arg0: i32) -> (i32, i32) {
    %c0_i32 = arith.constant 0 : i32
    %c0_i32_0 = arith.constant 0 : i32
    %c0_i32_1 = arith.constant 0 : i32
    return %c0_i32, %c0_i32_0 : i32, i32
  }
  func.func @transform_3(%arg0: i32) -> (i32, i32) {
    %c0_i32 = arith.constant 0 : i32
    %c0_i32_0 = arith.constant 0 : i32
    %c0_i32_1 = arith.constant 0 : i32
    return %c0_i32, %c0_i32_0 : i32, i32
  }
  func.func @transform_4(%arg0: i32) -> (i32, i32) {
    %c0_i32 = arith.constant 0 : i32
    %c0_i32_0 = arith.constant 0 : i32
    %c0_i32_1 = arith.constant 0 : i32
    return %c0_i32, %c0_i32_0 : i32, i32
  }
  func.func @transform_5(%arg0: i32) -> (i32, i32) {
    %c0_i32 = arith.constant 0 : i32
    %c0_i32_0 = arith.constant 0 : i32
    %c0_i32_1 = arith.constant 0 : i32
    return %c0_i32, %c0_i32_0 : i32, i32
  }
  func.func @transform_6(%arg0: i32) -> (i32, i32) {
    %c0_i32 = arith.constant 0 : i32
    %c0_i32_0 = arith.constant 0 : i32
    return %arg0, %c0_i32 : i32, i32
  }
}

</mosaic_0001>

<llo_original>
// kernel: tpu_custom_call.1
$region0: #{tpu_custom_call.1}
  #allocation0 [shape = 'u32[]', space=smem, size = 0x4, offset = 0x4, fixed_abs, tag = 'smem constant byte address 0x4 - core index']
  #allocation1 [shape = 'u32[144,128]{1,0:T(1,128)}', space=vmem, size = 0x12000, scoped, tag = 'internal scratch']
  %s0 = inlined_call_operand.hbm [shape: s32[8,8], index: 0, kind: input, shape index: {}]
  %s1 = inlined_call_operand.hbm [shape: f32[8,16], index: 1, kind: input, shape index: {}]
  %s2 = inlined_call_operand.hbm [shape: bf16[128,16], index: 2, kind: input, shape index: {}]
  %s3 = inlined_call_operand.hbm [shape: bf16[16,128], index: 3, kind: input, shape index: {}]
  %s4 = inlined_call_operand.hbm [shape: bf16[16,128], index: 4, kind: input, shape index: {}]
  %s5 = inlined_call_operand.hbm [shape: f32[1,128], index: 5, kind: input, shape index: {}]
  %s6 = inlined_call_operand.hbm [shape: f32[8,128], index: 6, kind: output, shape index: {}]
  %s7 = sld [smem:[#allocation0]]
  $region58: #{tpu_custom_call.1} parent=0
    _
  %s9 = ssub.s32 1, %s7
  %s10 = scalar_select 0, %s9, %s7
  $region1: #{tpu_custom_call.1} parent=0
    #allocation2 [shape = 'u8[4096]{0}', space=vmem, size = 0x1000, scoped, tag = 'input window, operand 0, single buffered']
    #allocation3 [shape = 's32[1]{0}', space=sflag, size = 0x4, scoped, tag = 'scoped memory for tpu_custom_call.1']
    #allocation4 [shape = 's32[1]{0}', space=sflag, size = 0x4, scoped, tag = 'scoped memory for tpu_custom_call.1']
    #allocation5 [shape = 'u8[4096]{0}', space=vmem, size = 0x1000, scoped, tag = 'input window, operand 1, single buffered']
    #allocation6 [shape = 's32[1]{0}', space=sflag, size = 0x4, scoped, tag = 'scoped memory for tpu_custom_call.1']
    #allocation7 [shape = 'u8[32768]{0}', space=vmem, size = 0x8000, scoped, tag = 'input window, operand 2, single buffered']
    #allocation8 [shape = 'u8[4096]{0}', space=vmem, size = 0x1000, scoped, tag = 'input window, operand 3, single buffered']
    #allocation9 [shape = 's32[1]{0}', space=sflag, size = 0x4, scoped, tag = 'scoped memory for tpu_custom_call.1']
    #allocation10 [shape = 'u8[4096]{0}', space=vmem, size = 0x1000, scoped, tag = 'input window, operand 4, single buffered']
    #allocation11 [shape = 'u8[512]{0}', space=vmem, size = 0x400, scoped, tag = 'input window, operand 5, single buffered']
    #allocation12 [shape = 's32[1]{0}', space=sflag, size = 0x4, scoped, tag = 'scoped memory for tpu_custom_call.1']
    #allocation13 [shape = 'u8[4096]{0}', space=vmem, size = 0x1000, scoped, tag = 'output window, operand 0, single buffered']
    %11 = vsyncpa [#allocation3], 0
    %12 = vsyncpa [#allocation6], 0
    %13 = vsyncpa [#allocation9], 0
    %14 = vsyncpa [#allocation12], 0
    %15 = vsyncpa [#allocation4], 0
    // Predicated region
    $region2: #{tpu_custom_call.1} parent=1 // pred_check
      _
    $region3: #{tpu_custom_call.1} parent=1 // pred_check_branch
      %17 = sbr.rel (0) target = $region5
    $region4: #{tpu_custom_call.1} parent=1 // pred_region
      %s19 = ssub.s32 128, 128
      %20 = vsyncadd [#allocation3], %s19
      %s22 = sshll.u32 [#allocation2], 4
      %s23 = int_to_ptr.vmem [resolvable:$true] %s22
      %25 = dma.hbm_to_vmem [thread:$0]  %s0, 128, %s23, [#allocation3]
    $region5: #{tpu_custom_call.1} parent=1 // pred_fallthru
      _
    // Predicated region
    $region6: #{tpu_custom_call.1} parent=1 // pred_check
      _
    $region7: #{tpu_custom_call.1} parent=1 // pred_check_branch
      %27 = sbr.rel (0) target = $region9
    $region8: #{tpu_custom_call.1} parent=1 // pred_region
      %s29 = ssub.s32 128, 128
      %30 = vsyncadd [#allocation6], %s29
      %s32 = sshll.u32 [#allocation5], 4
      %s33 = int_to_ptr.vmem [resolvable:$true] %s32
      %35 = dma.hbm_to_vmem [thread:$0]  %s1, 128, %s33, [#allocation6]
    $region9: #{tpu_custom_call.1} parent=1 // pred_fallthru
      _
    // Predicated region
    $region10: #{tpu_custom_call.1} parent=1 // pred_check
      _
    $region11: #{tpu_custom_call.1} parent=1 // pred_check_branch
      %37 = sbr.rel (0) target = $region13
    $region12: #{tpu_custom_call.1} parent=1 // pred_region
      %s39 = ssub.s32 1024, 1024
      %40 = vsyncadd [#allocation6], %s39
      %s41 = sshll.u32 [#allocation7], 4
      %s42 = int_to_ptr.vmem [resolvable:$true] %s41
      %47 = dma.hbm_to_vmem [thread:$0]  %s2, 1024, %s42, [#allocation6], 64, 64, 4
    $region13: #{tpu_custom_call.1} parent=1 // pred_fallthru
      _
    // Predicated region
    $region14: #{tpu_custom_call.1} parent=1 // pred_check
      _
    $region15: #{tpu_custom_call.1} parent=1 // pred_check_branch
      %49 = sbr.rel (0) target = $region17
    $region16: #{tpu_custom_call.1} parent=1 // pred_region
      %s51 = ssub.s32 128, 128
      %52 = vsyncadd [#allocation9], %s51
      %s53 = sshll.u32 [#allocation8], 4
      %s54 = int_to_ptr.vmem [resolvable:$true] %s53
      %59 = dma.hbm_to_vmem [thread:$0]  %s3, 128, %s54, [#allocation9], 64, 64, 4
    $region17: #{tpu_custom_call.1} parent=1 // pred_fallthru
      _
    // Predicated region
    $region18: #{tpu_custom_call.1} parent=1 // pred_check
      _
    $region19: #{tpu_custom_call.1} parent=1 // pred_check_branch
      %61 = sbr.rel (0) target = $region21
    $region20: #{tpu_custom_call.1} parent=1 // pred_region
      %s63 = ssub.s32 128, 128
      %64 = vsyncadd [#allocation9], %s63
      %s65 = sshll.u32 [#allocation10], 4
      %s66 = int_to_ptr.vmem [resolvable:$true] %s65
      %71 = dma.hbm_to_vmem [thread:$0]  %s4, 128, %s66, [#allocation9], 64, 64, 4
    $region21: #{tpu_custom_call.1} parent=1 // pred_fallthru
      _
    // Predicated region
    $region22: #{tpu_custom_call.1} parent=1 // pred_check
      _
    $region23: #{tpu_custom_call.1} parent=1 // pred_check_branch
      %73 = sbr.rel (0) target = $region25
    $region24: #{tpu_custom_call.1} parent=1 // pred_region
      %s75 = ssub.s32 16, 16
      %76 = vsyncadd [#allocation12], %s75
      %s78 = sshll.u32 [#allocation11], 4
      %s79 = int_to_ptr.vmem [resolvable:$true] %s78
      %81 = dma.hbm_to_vmem [thread:$0]  %s5, 16, %s79, [#allocation12]
    $region25: #{tpu_custom_call.1} parent=1 // pred_fallthru
      _
    // Predicated region
    $region26: #{tpu_custom_call.1} parent=1 // pred_check
      _
    $region27: #{tpu_custom_call.1} parent=1 // pred_check_branch
      %83 = sbr.rel (0) target = $region29
    $region28: #{tpu_custom_call.1} parent=1 // pred_region
      %84 = dma.done [#allocation3], 128
    $region29: #{tpu_custom_call.1} parent=1 // pred_fallthru
      _
    // Predicated region
    $region30: #{tpu_custom_call.1} parent=1 // pred_check
      _
    $region31: #{tpu_custom_call.1} parent=1 // pred_check_branch
      %86 = sbr.rel (0) target = $region33
    $region32: #{tpu_custom_call.1} parent=1 // pred_region
      %87 = dma.done [#allocation6], 128
    $region33: #{tpu_custom_call.1} parent=1 // pred_fallthru
      _
    // Predicated region
    $region34: #{tpu_custom_call.1} parent=1 // pred_check
      _
    $region35: #{tpu_custom_call.1} parent=1 // pred_check_branch
      %89 = sbr.rel (0) target = $region37
    $region36: #{tpu_custom_call.1} parent=1 // pred_region
      %90 = dma.done [#allocation6], 1024
    $region37: #{tpu_custom_call.1} parent=1 // pred_fallthru
      _
    // Predicated region
    $region38: #{tpu_custom_call.1} parent=1 // pred_check
      _
    $region39: #{tpu_custom_call.1} parent=1 // pred_check_branch
      %92 = sbr.rel (0) target = $region41
    $region40: #{tpu_custom_call.1} parent=1 // pred_region
      %93 = dma.done [#allocation9], 128
    $region41: #{tpu_custom_call.1} parent=1 // pred_fallthru
      _
    // Predicated region
    $region42: #{tpu_custom_call.1} parent=1 // pred_check
      _
    $region43: #{tpu_custom_call.1} parent=1 // pred_check_branch
      %95 = sbr.rel (0) target = $region45
    $region44: #{tpu_custom_call.1} parent=1 // pred_region
      %96 = dma.done [#allocation9], 128
    $region45: #{tpu_custom_call.1} parent=1 // pred_fallthru
      _
    // Predicated region
    $region46: #{tpu_custom_call.1} parent=1 // pred_check
      _
    $region47: #{tpu_custom_call.1} parent=1 // pred_check_branch
      %98 = sbr.rel (0) target = $region49
    $region48: #{tpu_custom_call.1} parent=1 // pred_region
      %99 = dma.done [#allocation12], 16
    $region49: #{tpu_custom_call.1} parent=1 // pred_fallthru
      _
    %v101 = vld [vmem:[#allocation2] sm:$0xff]
    %v102 = vlaneseq
    %v103 = vand.u32 %v102, 127
    %104 = vset.pattern.permute.xlu0 0
    %105 = vperm.xlu0 %104, %v101
    %v106 = vpop.permute.xlu0 %105
    %vm107 = vcmp.eq.s32.totalorder %v106, %v103
    %v108 = vsel %vm107, 1, 0
    %v109 = vcvt.s32.f32 %v108
    %v110 = vadd.f32 %v109, 0.0
    %111 = vset.pattern.permute.xlu0 1
    %112 = vperm.xlu0 %111, %v101
    %v113 = vpop.permute.xlu0 %112
    %vm114 = vcmp.eq.s32.totalorder %v113, %v103
    %v115 = vsel %vm114, 1, 0
    %v116 = vcvt.s32.f32 %v115
    %v117 = vadd.f32 %v110, %v116
    %118 = vset.pattern.permute.xlu0 2
    %119 = vperm.xlu0 %118, %v101
    %v120 = vpop.permute.xlu0 %119
    %vm121 = vcmp.eq.s32.totalorder %v120, %v103
    %v122 = vsel %vm121, 1, 0
    %v123 = vcvt.s32.f32 %v122
    %v124 = vadd.f32 %v117, %v123
    %125 = vset.pattern.permute.xlu0 3
    %126 = vperm.xlu0 %125, %v101
    %v127 = vpop.permute.xlu0 %126
    %vm128 = vcmp.eq.s32.totalorder %v127, %v103
    %v129 = vsel %vm128, 1, 0
    %v130 = vcvt.s32.f32 %v129
    %v131 = vadd.f32 %v124, %v130
    %132 = vset.pattern.permute.xlu0 4
    %133 = vperm.xlu0 %132, %v101
    %v134 = vpop.permute.xlu0 %133
    %vm135 = vcmp.eq.s32.totalorder %v134, %v103
    %v136 = vsel %vm135, 1, 0
    %v137 = vcvt.s32.f32 %v136
    %v138 = vadd.f32 %v131, %v137
    %139 = vset.pattern.permute.xlu0 5
    %140 = vperm.xlu0 %139, %v101
    %v141 = vpop.permute.xlu0 %140
    %vm142 = vcmp.eq.s32.totalorder %v141, %v103
    %v143 = vsel %vm142, 1, 0
    %v144 = vcvt.s32.f32 %v143
    %v145 = vadd.f32 %v138, %v144
    %146 = vset.pattern.permute.xlu0 6
    %147 = vperm.xlu0 %146, %v101
    %v148 = vpop.permute.xlu0 %147
    %vm149 = vcmp.eq.s32.totalorder %v148, %v103
    %v150 = vsel %vm149, 1, 0
    %v151 = vcvt.s32.f32 %v150
    %v152 = vadd.f32 %v145, %v151
    %153 = vset.pattern.permute.xlu0 7
    %154 = vperm.xlu0 %153, %v101
    %v155 = vpop.permute.xlu0 %154
    %vm156 = vcmp.eq.s32.totalorder %v155, %v103
    %v157 = vsel %vm156, 1, 0
    %v158 = vcvt.s32.f32 %v157
    %v159 = vadd.f32 %v152, %v158
    %v160 = vpack.c.bf16 %v159, %v159
    %v161 = vld [vmem:[#allocation7] sm:$0xf]
    %v162 = vld [vmem:[#allocation7 + $0x4] sm:$0xf]
    %v163 = vld [vmem:[#allocation7 + $0x8] sm:$0xf]
    %v164 = vld [vmem:[#allocation7 + $0xc] sm:$0xf]
    %v165 = vld [vmem:[#allocation7 + $0x10] sm:$0xf]
    %v166 = vld [vmem:[#allocation7 + $0x14] sm:$0xf]
    %v167 = vld [vmem:[#allocation7 + $0x18] sm:$0xf]
    %v168 = vld [vmem:[#allocation7 + $0x1c] sm:$0xf]
    %v169 = vld [vmem:[#allocation7 + $0x20] sm:$0xf]
    %v170 = vld [vmem:[#allocation7 + $0x24] sm:$0xf]
    %v171 = vld [vmem:[#allocation7 + $0x28] sm:$0xf]
    %v172 = vld [vmem:[#allocation7 + $0x2c] sm:$0xf]
    %v173 = vld [vmem:[#allocation7 + $0x30] sm:$0xf]
    %v174 = vld [vmem:[#allocation7 + $0x34] sm:$0xf]
    %v175 = vld [vmem:[#allocation7 + $0x38] sm:$0xf]
    %v176 = vld [vmem:[#allocation7 + $0x3c] sm:$0xf]
    %v193 = vunpack.c.l.b16 %v161
    %v194 = vunpack.c.l.b16 %v162
    %v195 = vunpack.c.l.b16 %v163
    %v196 = vunpack.c.l.b16 %v164
    %v197 = vunpack.c.l.b16 %v165
    %v198 = vunpack.c.l.b16 %v166
    %v199 = vunpack.c.l.b16 %v167
    %v200 = vunpack.c.l.b16 %v168
    %v201 = vunpack.c.l.b16 %v169
    %v202 = vunpack.c.l.b16 %v170
    %v203 = vunpack.c.l.b16 %v171
    %v204 = vunpack.c.l.b16 %v172
    %v205 = vunpack.c.l.b16 %v173
    %v206 = vunpack.c.l.b16 %v174
    %v207 = vunpack.c.l.b16 %v175
    %v208 = vunpack.c.l.b16 %v176
    %v209 = vpack.c.b16 %v194, %v193
    %v210 = vpack.c.b16 %v196, %v195
    %v211 = vpack.c.b16 %v198, %v197
    %v212 = vpack.c.b16 %v200, %v199
    %v213 = vpack.c.b16 %v202, %v201
    %v214 = vpack.c.b16 %v204, %v203
    %v215 = vpack.c.b16 %v206, %v205
    %v216 = vpack.c.b16 %v208, %v207
    %225 = vmatprep.subr.bf16.mxu0 0
    %226 = vmatpush1.bf16.msra.mxu0 %v209
    %227 = vmatprep.subr.bf16.mxu0 0
    %228 = vmatpush1.bf16.msra.mxu0 %v210
    %229 = vmatprep.subr.bf16.mxu0 0
    %230 = vmatpush1.bf16.msra.mxu0 %v211
    %231 = vmatprep.subr.bf16.mxu0 0
    %232 = vmatpush1.bf16.msra.mxu0 %v212
    %233 = vmatprep.subr.bf16.mxu0 0
    %234 = vmatpush1.bf16.msra.mxu0 %v213
    %235 = vmatprep.subr.bf16.mxu0 0
    %236 = vmatpush1.bf16.msra.mxu0 %v214
    %237 = vmatprep.subr.bf16.mxu0 0
    %238 = vmatpush1.bf16.msra.mxu0 %v215
    %239 = vmatprep.subr.bf16.mxu0 0
    %240 = vmatpush1.bf16.msra.mxu0 %v216
    %241 = vmatprep.subr.bf16.mxu0 0
    %242 = vmatpush1.bf16.msra.mxu0 0
    %243 = vmatprep.subr.bf16.mxu0 0
    %244 = vmatpush1.bf16.msra.mxu0 0
    %245 = vmatprep.subr.bf16.mxu0 0
    %246 = vmatpush1.bf16.msra.mxu0 0
    %247 = vmatprep.subr.bf16.mxu0 0
    %248 = vmatpush1.bf16.msra.mxu0 0
    %249 = vmatprep.subr.bf16.mxu0 0
    %250 = vmatpush1.bf16.msra.mxu0 0
    %251 = vmatprep.subr.bf16.mxu0 0
    %252 = vmatpush1.bf16.msra.mxu0 0
    %253 = vmatprep.subr.bf16.mxu0 0
    %254 = vmatpush1.bf16.msra.mxu0 0
    %255 = vmatprep.subr.bf16.mxu0 0
    %256 = vmatpush1.bf16.msra.mxu0 0
    %257 = vmatprep.mubr.bf16.mxu0 0
    %258 = vmatmul.mubr.bf16.gmra.mrb[0].mxu0 %v160
    %v259 = vpop.f32.mrb[0].mxu0
    %v260 = vadd.f32 0.0, %v259
    %v261 = vpop.f32.mrb[0].mxu0
    %v262 = vpop.f32.mrb[0].mxu0
    %v263 = vpop.f32.mrb[0].mxu0
    %264 = vdwg.mxu0
    %v265 = vld [vmem:[#allocation8] sm:$0xf]
    %v266 = vld [vmem:[#allocation8 + $0x4] sm:$0xf]
    %v267 = vunpack.c.l.bf16 %v265
    %v268 = vunpack.c.l.bf16 %v266
    %v269 = vld [vmem:[#allocation5] sm:$0xff]
    %v270 = vld [vmem:[#allocation10] sm:$0xf]
    %v271 = vld [vmem:[#allocation10 + $0x4] sm:$0xf]
    %v272 = vunpack.c.l.bf16 %v270
    %v273 = vunpack.c.l.bf16 %v271
    %vm274 = vcmask 130048
    %v276 = vsel %vm274, %v269, 0
    %278 = vmatprep.subr.mxu0 0.0
    %279 = vmatpush1.msra.mxu0 %v272
    %280 = vmatprep.subr.mxu0 0.0
    %281 = vmatpush1.msra.mxu0 %v273
    %282 = vmatprep.subr.mxu0 0.0
    %283 = vmatpush1.msra.mxu0 0.0
    %284 = vmatprep.subr.mxu0 0.0
    %285 = vmatpush1.msra.mxu0 0.0
    %286 = vmatprep.subr.mxu0 0.0
    %287 = vmatpush1.msra.mxu0 0.0
    %288 = vmatprep.subr.mxu0 0.0
    %289 = vmatpush1.msra.mxu0 0.0
    %290 = vmatprep.subr.mxu0 0.0
    %291 = vmatpush1.msra.mxu0 0.0
    %292 = vmatprep.subr.mxu0 0.0
    %293 = vmatpush1.msra.mxu0 0.0
    %294 = vmatprep.subr.mxu0 0.0
    %295 = vmatpush1.msra.mxu0 0.0
    %296 = vmatprep.subr.mxu0 0.0
    %297 = vmatpush1.msra.mxu0 0.0
    %298 = vmatprep.subr.mxu0 0.0
    %299 = vmatpush1.msra.mxu0 0.0
    %300 = vmatprep.subr.mxu0 0.0
    %301 = vmatpush1.msra.mxu0 0.0
    %302 = vmatprep.subr.mxu0 0.0
    %303 = vmatpush1.msra.mxu0 0.0
    %304 = vmatprep.subr.mxu0 0.0
    %305 = vmatpush1.msra.mxu0 0.0
    %306 = vmatprep.subr.mxu0 0.0
    %307 = vmatpush1.msra.mxu0 0.0
    %308 = vmatprep.subr.mxu0 0.0
    %309 = vmatpush1.msra.mxu0 0.0
    %310 = vmatprep.subr.mxu0 0.0
    %311 = vmatpush1.msra.mxu0 0.0
    %312 = vmatprep.subr.mxu0 0.0
    %313 = vmatpush1.msra.mxu0 0.0
    %314 = vmatprep.subr.mxu0 0.0
    %315 = vmatpush1.msra.mxu0 0.0
    %316 = vmatprep.subr.mxu0 0.0
    %317 = vmatpush1.msra.mxu0 0.0
    %318 = vmatprep.subr.mxu0 0.0
    %319 = vmatpush1.msra.mxu0 0.0
    %320 = vmatprep.subr.mxu0 0.0
    %321 = vmatpush1.msra.mxu0 0.0
    %322 = vmatprep.subr.mxu0 0.0
    %323 = vmatpush1.msra.mxu0 0.0
    %324 = vmatprep.subr.mxu0 0.0
    %325 = vmatpush1.msra.mxu0 0.0
    %326 = vmatprep.subr.mxu0 0.0
    %327 = vmatpush1.msra.mxu0 0.0
    %328 = vmatprep.subr.mxu0 0.0
    %329 = vmatpush1.msra.mxu0 0.0
    %330 = vmatprep.subr.mxu0 0.0
    %331 = vmatpush1.msra.mxu0 0.0
    %332 = vmatprep.subr.mxu0 0.0
    %333 = vmatpush1.msra.mxu0 0.0
    %334 = vmatprep.subr.mxu0 0.0
    %335 = vmatpush1.msra.mxu0 0.0
    %336 = vmatprep.subr.mxu0 0.0
    %337 = vmatpush1.msra.mxu0 0.0
    %338 = vmatprep.subr.mxu0 0.0
    %339 = vmatpush1.msra.mxu0 0.0
    %340 = vmatprep.subr.mxu0 0.0
    %341 = vmatpush1.msra.mxu0 0.0
    %342 = vmatprep.mubr.f32.mxu0 0.0
    %343 = vmatmul.mubr.f32.gmra.mrb[0].mxu0 %v276
    %v344 = vpop.f32.mrb[0].mxu0
    %v345 = vadd.f32 0.0, %v344
    %v346 = vpop.f32.mrb[0].mxu0
    %347 = vdwg.mxu0
    %v349 = vsel %vm274, %v260, 0
    %351 = vmatprep.subr.mxu0 0.0
    %352 = vmatpush1.msra.mxu0 %v267
    %353 = vmatprep.subr.mxu0 0.0
    %354 = vmatpush1.msra.mxu0 %v268
    %355 = vmatprep.subr.mxu0 0.0
    %356 = vmatpush1.msra.mxu0 0.0
    %357 = vmatprep.subr.mxu0 0.0
    %358 = vmatpush1.msra.mxu0 0.0
    %359 = vmatprep.subr.mxu0 0.0
    %360 = vmatpush1.msra.mxu0 0.0
    %361 = vmatprep.subr.mxu0 0.0
    %362 = vmatpush1.msra.mxu0 0.0
    %363 = vmatprep.subr.mxu0 0.0
    %364 = vmatpush1.msra.mxu0 0.0
    %365 = vmatprep.subr.mxu0 0.0
    %366 = vmatpush1.msra.mxu0 0.0
    %367 = vmatprep.subr.mxu0 0.0
    %368 = vmatpush1.msra.mxu0 0.0
    %369 = vmatprep.subr.mxu0 0.0
    %370 = vmatpush1.msra.mxu0 0.0
    %371 = vmatprep.subr.mxu0 0.0
    %372 = vmatpush1.msra.mxu0 0.0
    %373 = vmatprep.subr.mxu0 0.0
    %374 = vmatpush1.msra.mxu0 0.0
    %375 = vmatprep.subr.mxu0 0.0
    %376 = vmatpush1.msra.mxu0 0.0
    %377 = vmatprep.subr.mxu0 0.0
    %378 = vmatpush1.msra.mxu0 0.0
    %379 = vmatprep.subr.mxu0 0.0
    %380 = vmatpush1.msra.mxu0 0.0
    %381 = vmatprep.subr.mxu0 0.0
    %382 = vmatpush1.msra.mxu0 0.0
    %383 = vmatprep.subr.mxu0 0.0
    %384 = vmatpush1.msra.mxu0 0.0
    %385 = vmatprep.subr.mxu0 0.0
    %386 = vmatpush1.msra.mxu0 0.0
    %387 = vmatprep.subr.mxu0 0.0
    %388 = vmatpush1.msra.mxu0 0.0
    %389 = vmatprep.subr.mxu0 0.0
    %390 = vmatpush1.msra.mxu0 0.0
    %391 = vmatprep.subr.mxu0 0.0
    %392 = vmatpush1.msra.mxu0 0.0
    %393 = vmatprep.subr.mxu0 0.0
    %394 = vmatpush1.msra.mxu0 0.0
    %395 = vmatprep.subr.mxu0 0.0
    %396 = vmatpush1.msra.mxu0 0.0
    %397 = vmatprep.subr.mxu0 0.0
    %398 = vmatpush1.msra.mxu0 0.0
    %399 = vmatprep.subr.mxu0 0.0
    %400 = vmatpush1.msra.mxu0 0.0
    %401 = vmatprep.subr.mxu0 0.0
    %402 = vmatpush1.msra.mxu0 0.0
    %403 = vmatprep.subr.mxu0 0.0
    %404 = vmatpush1.msra.mxu0 0.0
    %405 = vmatprep.subr.mxu0 0.0
    %406 = vmatpush1.msra.mxu0 0.0
    %407 = vmatprep.subr.mxu0 0.0
    %408 = vmatpush1.msra.mxu0 0.0
    %409 = vmatprep.subr.mxu0 0.0
    %410 = vmatpush1.msra.mxu0 0.0
    %411 = vmatprep.subr.mxu0 0.0
    %412 = vmatpush1.msra.mxu0 0.0
    %413 = vmatprep.subr.mxu0 0.0
    %414 = vmatpush1.msra.mxu0 0.0
    %415 = vmatprep.mubr.f32.mxu0 0.0
    %416 = vmatmul.mubr.f32.gmra.mrb[0].mxu0 %v349
    %v417 = vpop.f32.mrb[0].mxu0
    %v418 = vadd.f32 %v345, %v417
    %v419 = vpop.f32.mrb[0].mxu0
    %420 = vdwg.mxu0
    %v421 = vld [vmem:[#allocation11] sm:$0x1]
    %v423 = vlaneseq
    %v424 = vshrl.u32 %v423, 7
    %v425 = vsub.s32 0, %v424
    %v426 = vrot.slane %v421, %v425
    %v428 = vadd.f32 %v418, %v426
    %429 = vmax.xlane.f32.xlu0 %v428
    %v430 = vpop.xlane.xlu0 %429
    %v431 = vsub.f32 %v428, %v430
    %v432 = vmul.f32 %v431, 1.442695
    %v433 = vpow.pop %v432
    %434 = vadd.xlane.f32.xlu0 %v433
    %v435 = vpop.xlane.xlu0 %434
    %v436 = vlog2.pop %v435
    %v437 = vmul.f32 %v436, 0.6931472
    %v438 = vadd.f32 %v430, %v437
    %v439 = vsub.f32 %v428, %v438
    %440 = vst [vmem:[#allocation13] sm:$0xff] %v439
    // Predicated region
    $region50: #{tpu_custom_call.1} parent=1 // pred_check
      _
    $region51: #{tpu_custom_call.1} parent=1 // pred_check_branch
      %442 = sbr.rel (0) target = $region53
    $region52: #{tpu_custom_call.1} parent=1 // pred_region
      %s444 = ssub.s32 128, 128
      %445 = vsyncadd [#allocation4], %s444
      %s447 = sshll.u32 [#allocation13], 4
      %s448 = int_to_ptr.vmem [resolvable:$true] %s447
      %450 = dma.vmem_to_hbm [thread:$0]  %s448, 128, %s6, [#allocation4]
    $region53: #{tpu_custom_call.1} parent=1 // pred_fallthru
      _
    // Predicated region
    $region54: #{tpu_custom_call.1} parent=1 // pred_check
      _
    $region55: #{tpu_custom_call.1} parent=1 // pred_check_branch
      %452 = sbr.rel (0) target = $region57
    $region56: #{tpu_custom_call.1} parent=1 // pred_region
      %453 = dma.done [#allocation4], 128
    $region57: #{tpu_custom_call.1} parent=1 // pred_fallthru
      _
    %454 = vsyncpa [#allocation3], 1
    %455 = vsyncpa [#allocation6], 1
    %456 = vsyncpa [#allocation9], 1
    %457 = vsyncpa [#allocation12], 1
    %458 = vsyncpa [#allocation4], 1

</llo_original>
